<compile_context>
chip_gen: v5e
topology: v5e:2x2
jax: 0.10.0
libtpu: 0.0.40
codegen_flags: <defaults>
</compile_context>

<pallas_src>
import functools

import jax
import jax.numpy as jnp
from jax.experimental import pallas as pl
from jax.experimental.pallas import tpu as pltpu

LANES = 128
CHUNK_ROWS = 512            # in-kernel strip: ~256 KiB f32 intermediates per tensor
MAX_BLOCK_ROWS = 8192       # HBM-facing block: 8192 x 128 f32 = 4 MiB per input buffer
VMEM_LIMIT_BYTES = 32 * 1024 * 1024  # raise v5e's 16 MiB default; v6e/v7x default value


def _cdiv(a, b):
    return -(-a // b)


def _bce_block_kernel(pred_ref, gt_ref, psum_ref, *, chunk_rows, n_chunks,
                      last_valid_rows, needs_mask, hard_labels):
    """Per-block BCE partial sum.

    pred_ref/gt_ref: (block_rows, 128) tiles (native dtype, upcast in-register)
    psum_ref:        (8, 128) lane-dense per-block partial sum (f32)
    """

    def chunk_partial(c, masked):
        # Slice a (chunk_rows, 128) strip out of the VMEM block; only this strip's
        # intermediates are live, so the full block loss tile never materializes.
        if isinstance(c, int):
            r0 = c * chunk_rows
        else:
            r0 = pl.multiple_of(c * chunk_rows, chunk_rows)
        p = pred_ref[pl.ds(r0, chunk_rows), :].astype(jnp.float32)
        g = gt_ref[pl.ds(r0, chunk_rows), :].astype(jnp.float32)

        if hard_labels:
            # Targets are exactly 0/1: one log per element (halves EUP traffic).
            p_true = jnp.where(g >= 0.5, p, 1.0 - p)
            loss = -jnp.maximum(jnp.log(p_true), jnp.float32(-100.0))
        else:
            # PyTorch binary_cross_entropy clamps each log term at -100.
            log_p = jnp.maximum(jnp.log(p), jnp.float32(-100.0))
            log_1mp = jnp.maximum(jnp.log(1.0 - p), jnp.float32(-100.0))
            loss = -(g * log_p + (1.0 - g) * log_1mp)

        if masked:
            # Only the last (partial) block carries out-of-bounds garbage rows;
            # zero them before the sum (block-local row index).
            row = jax.lax.broadcasted_iota(jnp.int32, loss.shape, 0)
            row = row + c * chunk_rows
            loss = jnp.where(row < jnp.int32(last_valid_rows), loss,
                             jnp.float32(0.0))

        # (chunk_rows, 128) -> (chunk_rows//8, 8, 128) -> (8, 128): pure VPU
        # vreg adds, no cross-lane XLU reduce in the hot path.
        return loss.reshape(-1, 8, LANES).sum(axis=0)

    def block_sum(masked):
        if n_chunks == 1:
            return chunk_partial(0, masked)
        return jax.lax.fori_loop(
            0, n_chunks,
            lambda c, acc: acc + chunk_partial(c, masked),
            jnp.zeros((8, LANES), jnp.float32))

    if needs_mask:
        i = pl.program_id(0)
        last = pl.num_programs(0) - 1

        @pl.when(i != last)
        def _():
            psum_ref[...] = block_sum(False)

        @pl.when(i == last)
        def _():
            psum_ref[...] = block_sum(True)
    else:
        psum_ref[...] = block_sum(False)


def bce_loss_pallas(pred, gt, hard_labels=False):
    """Mean binary cross-entropy of flattened pred/gt (same shape).

    hard_labels=True is an optimization valid only when gt is exactly 0/1
    everywhere (one transcendental per element instead of two).
    """
    assert pred.shape == gt.shape
    pred_flat = pred.reshape(-1)
    gt_flat = gt.reshape(-1)
    n = pred_flat.shape[0]
    assert n > 0

    itemsize = max(1, pred_flat.dtype.itemsize)
    # Packed sublane granularity: 8 rows (f32), 16 (bf16/f16), 32 (int8/fp8).
    row_align = 8 * max(1, 4 // itemsize)
    granule = row_align * LANES
    n_kernel = (n // granule) * granule  # aligned bulk handled by the kernel
    total = jnp.float32(0.0)

    if n_kernel > 0:
        rows = n_kernel // LANES                       # multiple of row_align
        chunk_rows = min(CHUNK_ROWS, rows)             # multiple of row_align
        n_chunks_total = _cdiv(rows, chunk_rows)
        max_chunks_per_block = max(1, MAX_BLOCK_ROWS // chunk_rows)
        if n_chunks_total > 1:
            # Aim for >= 2 grid blocks so both v7x TensorCores get work.
            chunks_per_block = min(max_chunks_per_block,
                                   _cdiv(n_chunks_total, 2))
        else:
            chunks_per_block = 1
        block_rows = chunks_per_block * chunk_rows     # <= rows, multiple of chunk
        n_blocks = _cdiv(rows, block_rows)
        last_valid_rows = rows - (n_blocks - 1) * block_rows
        needs_mask = last_valid_rows != block_rows

        pred2d = pred_flat[:n_kernel].reshape(rows, LANES)
        gt2d = gt_flat[:n_kernel].reshape(rows, LANES)

        kernel = functools.partial(
            _bce_block_kernel,
            chunk_rows=chunk_rows,
            n_chunks=chunks_per_block,
            last_valid_rows=last_valid_rows,
            needs_mask=needs_mask,
            hard_labels=hard_labels,
        )

        cost = pl.CostEstimate(
            flops=9 * n_kernel,
            transcendentals=(1 if hard_labels else 2) * n_kernel,
            bytes_accessed=2 * n_kernel * itemsize + n_blocks * 8 * LANES * 4,
        )

        partials = pl.pallas_call(
            kernel,
            out_shape=jax.ShapeDtypeStruct((n_blocks * 8, LANES), jnp.float32),
            grid_spec=pltpu.PrefetchScalarGridSpec(
                num_scalar_prefetch=0,
                grid=(n_blocks,),
                in_specs=[
                    pl.BlockSpec((block_rows, LANES), lambda i: (i, 0)),
                    pl.BlockSpec((block_rows, LANES), lambda i: (i, 0)),
                ],
                out_specs=pl.BlockSpec((8, LANES), lambda i: (i, 0)),
            ),
            compiler_params=pltpu.CompilerParams(
                dimension_semantics=("parallel",),
                vmem_limit_bytes=VMEM_LIMIT_BYTES),
            cost_estimate=cost,
        )(pred2d, gt2d)
        total = total + jnp.sum(partials)

    if n_kernel < n:
        # Sub-tile remainder (< row_align*128 elements): negligible, plain jnp.
        p_t = pred_flat[n_kernel:].astype(jnp.float32)
        g_t = gt_flat[n_kernel:].astype(jnp.float32)
        log_p = jnp.maximum(jnp.log(p_t), -100.0)
        log_1mp = jnp.maximum(jnp.log(1.0 - p_t), -100.0)
        total = total + jnp.sum(-(g_t * log_p + (1.0 - g_t) * log_1mp))

    return total / jnp.float32(n)


class BCELossV2:
    """JAX/Pallas port of BCE_Lossv2 (forward only).

    bg_weight is accepted but (exactly like the reference module's forward,
    which calls F.binary_cross_entropy without a weight) unused in forward.
    """

    def __init__(self, output_key=0, target_key=0, bg_weight=1):
        self.output_key = output_key
        self.target_key = target_key
        self.bg_weight = bg_weight

    def __call__(self, target, predict, hard_labels=False):
        gt = target[self.target_key]
        pred = predict[self.output_key]
        assert gt.shape == pred.shape
        return bce_loss_pallas(pred, gt, hard_labels=hard_labels)


def _ref_bce(pred, gt):
    # Pure-JAX reference with PyTorch's clamp-at-(-100) semantics.
    log_p = jnp.maximum(jnp.log(pred), -100.0)
    log_1mp = jnp.maximum(jnp.log(1.0 - pred), -100.0)
    return jnp.mean(-(gt * log_p + (1.0 - gt) * log_1mp))


if __name__ == "__main__":
    key = jax.random.PRNGKey(0)
    k1, k2, k3, k4 = jax.random.split(key, 4)

    # Primary small NCHW inputs; pred in (0,1), gt hard 0/1.
    shape = (2, 4, 16, 16)
    pred = jax.nn.sigmoid(jax.random.normal(k1, shape, dtype=jnp.float32))
    gt = (jax.random.uniform(k2, shape, dtype=jnp.float32) > 0.5).astype(
        jnp.float32)

    loss_fn = BCELossV2(output_key=0, target_key=0)
    loss = jax.block_until_ready(loss_fn({0: gt}, {0: pred}))
    ref = _ref_bce(pred, gt)
    assert jnp.allclose(loss, ref, rtol=1e-5, atol=1e-6), (loss, ref)

    # Hard-label single-log fast path: identical result for 0/1 targets.
    loss_hard = jax.block_until_ready(
        loss_fn({0: gt}, {0: pred}, hard_labels=True))
    assert jnp.allclose(loss_hard, ref, rtol=1e-5, atol=1e-6), (loss_hard, ref)

    # Larger case exercising multi-block grid, in-kernel chunk loop, and the
    # masked partial boundary block.
    shape2 = (2, 4, 128, 144)
    pred2 = jax.nn.sigmoid(jax.random.normal(k3, shape2, dtype=jnp.float32))
    gt2 = jax.random.uniform(k4, shape2, dtype=jnp.float32)  # soft targets
    loss2 = jax.block_until_ready(bce_loss_pallas(pred2, gt2))
    ref2 = _ref_bce(pred2, gt2)
    assert jnp.allclose(loss2, ref2, rtol=1e-5, atol=1e-6), (loss2, ref2)

    # Tiny case that falls entirely into the plain-jnp tail path.
    shape3 = (1, 3, 17, 19)
    pred3 = jax.nn.sigmoid(jax.random.normal(k1, shape3, dtype=jnp.float32))
    gt3 = jax.random.uniform(k2, shape3, dtype=jnp.float32)
    loss3 = jax.block_until_ready(bce_loss_pallas(pred3, gt3))
    ref3 = _ref_bce(pred3, gt3)
    assert jnp.allclose(loss3, ref3, rtol=1e-5, atol=1e-6), (loss3, ref3)

    print("KERNEL_OK")
</pallas_src>

<mosaic_0001>
module attributes {stable_mosaic.version = 11 : i64} {
  func.func @_bce_block_kernel(%arg0: i32, %arg1: memref<16x128xf32, #tpu.memory_space<vmem>>, %arg2: memref<16x128xf32, #tpu.memory_space<vmem>>, %arg3: memref<8x128xf32, #tpu.memory_space<vmem>>) attributes {dimension_semantics = [#tpu.dimension_semantics<parallel>], iteration_bounds = array<i64: 1>, scalar_prefetch = 0 : i64, scratch_operands = 0 : i64, tpu.core_type = #tpu.core_type<tc>, window_params = [{transform_indices = @transform_0, window_bounds = array<i64: 16, 128>}, {transform_indices = @transform_1, window_bounds = array<i64: 16, 128>}, {transform_indices = @transform_2, window_bounds = array<i64: 8, 128>}]} {
    %c0 = arith.constant 0 : index
    %c0_0 = arith.constant 0 : index
    %0 = vector.load %arg1[%c0, %c0_0] : memref<16x128xf32, #tpu.memory_space<vmem>>, vector<16x128xf32>
    %c0_1 = arith.constant 0 : index
    %c0_2 = arith.constant 0 : index
    %1 = vector.load %arg2[%c0_1, %c0_2] : memref<16x128xf32, #tpu.memory_space<vmem>>, vector<16x128xf32>
    %2 = math.log %0 : vector<16x128xf32>
    %cst = arith.constant -1.000000e+02 : f32
    %3 = vector.broadcast %cst : f32 to vector<16x128xf32>
    %4 = arith.maximumf %2, %3 : vector<16x128xf32>
    %cst_3 = arith.constant 1.000000e+00 : f32
    %5 = vector.broadcast %cst_3 : f32 to vector<16x128xf32>
    %6 = arith.subf %5, %0 : vector<16x128xf32>
    %7 = math.log %6 : vector<16x128xf32>
    %cst_4 = arith.constant -1.000000e+02 : f32
    %8 = vector.broadcast %cst_4 : f32 to vector<16x128xf32>
    %9 = arith.maximumf %7, %8 : vector<16x128xf32>
    %10 = arith.mulf %1, %4 : vector<16x128xf32>
    %cst_5 = arith.constant 1.000000e+00 : f32
    %11 = vector.broadcast %cst_5 : f32 to vector<16x128xf32>
    %12 = arith.subf %11, %1 : vector<16x128xf32>
    %13 = arith.mulf %12, %9 : vector<16x128xf32>
    %14 = arith.addf %10, %13 : vector<16x128xf32>
    %cst_6 = arith.constant 0.000000e+00 : f32
    %15 = vector.broadcast %cst_6 : f32 to vector<16x128xf32>
    %16 = arith.subf %15, %14 : vector<16x128xf32>
    %17 = vector.shape_cast %16 : vector<16x128xf32> to vector<2x8x128xf32>
    %cst_7 = arith.constant dense<0.000000e+00> : vector<8x128xf32>
    %18 = vector.multi_reduction <add>, %17, %cst_7 [0] : vector<2x8x128xf32> to vector<8x128xf32>
    %c0_8 = arith.constant 0 : index
    %c0_9 = arith.constant 0 : index
    %19 = vector.load %arg3[%c0_8, %c0_9] : memref<8x128xf32, #tpu.memory_space<vmem>>, vector<8x128xf32>
    tpu.vector_store %arg3[%c0_8, %c0_9], %18 {strides = array<i32>} : memref<8x128xf32, #tpu.memory_space<vmem>>, vector<8x128xf32>,
    return
  }
  func.func @transform_0(%arg0: i32) -> (i32, i32) {
    %c0_i32 = arith.constant 0 : i32
    %c0_i32_0 = arith.constant 0 : i32
    return %arg0, %c0_i32 : i32, i32
  }
  func.func @transform_1(%arg0: i32) -> (i32, i32) {
    %c0_i32 = arith.constant 0 : i32
    %c0_i32_0 = arith.constant 0 : i32
    return %arg0, %c0_i32 : i32, i32
  }
  func.func @transform_2(%arg0: i32) -> (i32, i32) {
    %c0_i32 = arith.constant 0 : i32
    %c0_i32_0 = arith.constant 0 : i32
    return %arg0, %c0_i32 : i32, i32
  }
}

</mosaic_0001>

<llo_original>
// kernel: tpu_custom_call.1
$region0: #{tpu_custom_call.1}
  #allocation0 [shape = 'u32[]', space=smem, size = 0x4, offset = 0x4, fixed_abs, tag = 'smem constant byte address 0x4 - core index']
  #allocation1 [shape = 'u32[72,128]{1,0:T(1,128)}', space=vmem, size = 0x9000, scoped, tag = 'internal scratch']
  %s0 = inlined_call_operand.hbm [shape: f32[16,128], index: 0, kind: input, shape index: {}]
  %s1 = inlined_call_operand.hbm [shape: f32[16,128], index: 1, kind: input, shape index: {}]
  %s2 = inlined_call_operand.hbm [shape: f32[8,128], index: 2, kind: output, shape index: {}]
  %s3 = sld [smem:[#allocation0]]
  $region26: #{tpu_custom_call.1} parent=0
    _
  %s5 = ssub.s32 1, %s3
  %s6 = scalar_select 0, %s5, %s3
  $region1: #{tpu_custom_call.1} parent=0
    #allocation2 [shape = 'u8[8192]{0}', space=vmem, size = 0x2000, scoped, tag = 'input window, operand 0, single buffered']
    #allocation3 [shape = 's32[1]{0}', space=sflag, size = 0x4, scoped, tag = 'scoped memory for tpu_custom_call.1']
    #allocation4 [shape = 's32[1]{0}', space=sflag, size = 0x4, scoped, tag = 'scoped memory for tpu_custom_call.1']
    #allocation5 [shape = 'u8[8192]{0}', space=vmem, size = 0x2000, scoped, tag = 'input window, operand 1, single buffered']
    #allocation6 [shape = 's32[1]{0}', space=sflag, size = 0x4, scoped, tag = 'scoped memory for tpu_custom_call.1']
    #allocation7 [shape = 'u8[4096]{0}', space=vmem, size = 0x1000, scoped, tag = 'output window, operand 0, single buffered']
    %7 = vsyncpa [#allocation3], 0
    %8 = vsyncpa [#allocation6], 0
    %9 = vsyncpa [#allocation4], 0
    // Predicated region
    $region2: #{tpu_custom_call.1} parent=1 // pred_check
      _
    $region3: #{tpu_custom_call.1} parent=1 // pred_check_branch
      %11 = sbr.rel (0) target = $region5
    $region4: #{tpu_custom_call.1} parent=1 // pred_region
      %13 = vsyncadd [#allocation3], 0
      %s14 = sshll.u32 %s0, 4
      %s15 = int_to_ptr.hbm [resolvable:$true] %s14
      %s16 = sshll.u32 [#allocation2], 4
      %s17 = int_to_ptr.vmem [resolvable:$true] %s16
      %22 = dma.hbm_to_vmem [thread:$0]  %s15, 256, %s17, [#allocation3], 128, 128, 8
    $region5: #{tpu_custom_call.1} parent=1 // pred_fallthru
      _
    // Predicated region
    $region6: #{tpu_custom_call.1} parent=1 // pred_check
      _
    $region7: #{tpu_custom_call.1} parent=1 // pred_check_branch
      %24 = sbr.rel (0) target = $region9
    $region8: #{tpu_custom_call.1} parent=1 // pred_region
      %26 = vsyncadd [#allocation6], 0
      %s27 = sshll.u32 %s1, 4
      %s28 = int_to_ptr.hbm [resolvable:$true] %s27
      %s29 = sshll.u32 [#allocation5], 4
      %s30 = int_to_ptr.vmem [resolvable:$true] %s29
      %35 = dma.hbm_to_vmem [thread:$0]  %s28, 256, %s30, [#allocation6], 128, 128, 8
    $region9: #{tpu_custom_call.1} parent=1 // pred_fallthru
      _
    // Predicated region
    $region10: #{tpu_custom_call.1} parent=1 // pred_check
      _
    $region11: #{tpu_custom_call.1} parent=1 // pred_check_branch
      %37 = sbr.rel (0) target = $region13
    $region12: #{tpu_custom_call.1} parent=1 // pred_region
      %39 = dma.done [#allocation3], 256
    $region13: #{tpu_custom_call.1} parent=1 // pred_fallthru
      _
    // Predicated region
    $region14: #{tpu_custom_call.1} parent=1 // pred_check
      _
    $region15: #{tpu_custom_call.1} parent=1 // pred_check_branch
      %41 = sbr.rel (0) target = $region17
    $region16: #{tpu_custom_call.1} parent=1 // pred_region
      %43 = dma.done [#allocation6], 256
    $region17: #{tpu_custom_call.1} parent=1 // pred_fallthru
      _
    %v44 = vld [vmem:[#allocation2] sm:$0xff]
    %v45 = vld [vmem:[#allocation2 + $0x8] sm:$0xff]
    %v46 = vld [vmem:[#allocation5] sm:$0xff]
    %v47 = vld [vmem:[#allocation5 + $0x8] sm:$0xff]
    %v48 = vlog2.pop %v44
    %v49 = vmul.f32 %v48, 0.6931472
    %v50 = vlog2.pop %v45
    %v51 = vmul.f32 %v50, 0.6931472
    %v52 = vmax.f32 %v49, -100.0
    %v53 = vmax.f32 %v51, -100.0
    %v54 = vsub.f32 1.0, %v44
    %v55 = vsub.f32 1.0, %v45
    %v56 = vlog2.pop %v54
    %v57 = vmul.f32 %v56, 0.6931472
    %v58 = vlog2.pop %v55
    %v59 = vmul.f32 %v58, 0.6931472
    %v60 = vmax.f32 %v57, -100.0
    %v61 = vmax.f32 %v59, -100.0
    %v62 = vmul.f32 %v46, %v52
    %v63 = vmul.f32 %v47, %v53
    %v64 = vsub.f32 1.0, %v46
    %v65 = vsub.f32 1.0, %v47
    %v66 = vmul.f32 %v64, %v60
    %v67 = vmul.f32 %v65, %v61
    %v68 = vadd.f32 %v62, %v66
    %v69 = vadd.f32 %v63, %v67
    %v70 = vsub.f32 0.0, %v68
    %v71 = vsub.f32 0.0, %v69
    %v72 = vadd.f32 %v70, %v71
    %73 = vst [vmem:[#allocation7] sm:$0xff] %v72
    // Predicated region
    $region18: #{tpu_custom_call.1} parent=1 // pred_check
      _
    $region19: #{tpu_custom_call.1} parent=1 // pred_check_branch
      %75 = sbr.rel (0) target = $region21
    $region20: #{tpu_custom_call.1} parent=1 // pred_region
      %77 = vsyncadd [#allocation4], 0
      %s79 = sshll.u32 [#allocation7], 4
      %s80 = int_to_ptr.vmem [resolvable:$true] %s79
      %s81 = sshll.u32 %s2, 4
      %s82 = int_to_ptr.hbm [resolvable:$true] %s81
      %84 = dma.vmem_to_hbm [thread:$0]  %s80, 128, %s82, [#allocation4]
    $region21: #{tpu_custom_call.1} parent=1 // pred_fallthru
      _
    // Predicated region
    $region22: #{tpu_custom_call.1} parent=1 // pred_check
      _
    $region23: #{tpu_custom_call.1} parent=1 // pred_check_branch
      %86 = sbr.rel (0) target = $region25
    $region24: #{tpu_custom_call.1} parent=1 // pred_region
      %88 = dma.done [#allocation4], 128
    $region25: #{tpu_custom_call.1} parent=1 // pred_fallthru
      _
    %89 = vsyncpa [#allocation3], 1
    %90 = vsyncpa [#allocation6], 1
    %91 = vsyncpa [#allocation4], 1

</llo_original>
